<compile_context>
chip_gen: v7x
topology: tpu7x:2x2x1
jax: 0.10.0
libtpu: 0.0.40
codegen_flags: <defaults>
</compile_context>

<pallas_src>
import jax
import jax.numpy as jnp
from jax import lax
from jax.experimental import pallas as pl
from jax.experimental.pallas import tpu as pltpu


_TINY_BYTES = 1 << 20  # below this, a single XLA fused add beats a kernel launch


def _add_noise_kernel(x_ref, noise_ref, o_ref):
    # x_ref: (TB, F) batch tile; noise_ref: (1, F) masked noise row, already in
    # the activation dtype; broadcasts over the batch tile.
    o_ref[...] = (x_ref[...] + noise_ref[...]).astype(o_ref.dtype)


def _sublane_multiple(dtype):
    """Sublane packing for the dtype: 8 (f32), 16 (bf16), 32 (int8/fp8)."""
    return max(8, 32 // jnp.dtype(dtype).itemsize)


def _vmem_budget_bytes():
    """Scoped-VMEM budget, generation-aware (v7x: 64 MiB physical per TC)."""
    cap = 64 * 1024 * 1024  # conservative fallback = smallest physical VMEM
    try:
        info_cap = int(pltpu.get_tpu_info().vmem_capacity_bytes)
        if info_cap > 0:
            cap = info_cap
    except Exception:
        pass
    # Leave ~25% physical headroom; never ask for more than 96 MiB.
    return int(min(cap * 3 // 4, 96 * 1024 * 1024))


def _choose_batch_tile(B, F, dtype, budget_bytes):
    """Largest sublane-aligned batch tile whose double-buffered refs fit the
    budget, while keeping >= 2 grid steps for large B (v7x has 2 TCs)."""
    sub = _sublane_multiple(dtype)
    if B <= sub:
        return B  # block equals full dim -> satisfies the (8,128) rule
    itemsize = jnp.dtype(dtype).itemsize
    per_row = 4 * F * itemsize  # (1 in + 1 out) refs x 2 pipeline buffers
    tb = max(sub, (budget_bytes // per_row) // sub * sub)
    if B > 2 * sub:
        # Keep at least 2 grid steps so the parallel grid can use both cores.
        tb = min(tb, max(sub, (B // 2) // sub * sub))
    else:
        tb = min(tb, B)
    return tb


def _pallas_add_noise(x, noise_row, *, donate=False):
    """x: (B, F); noise_row: (1, F). Returns x + noise_row via Pallas."""
    B, F = x.shape
    dtype = x.dtype
    noise_row = noise_row.astype(dtype)  # keep the in-kernel add in x's dtype
    itemsize = jnp.dtype(dtype).itemsize

    budget = _vmem_budget_bytes()
    tb = _choose_batch_tile(B, F, dtype, budget)
    grid = (pl.cdiv(B, tb),)

    # Actual working set (double-buffered in/out tiles + noise row).
    working = 4 * tb * F * itemsize + 2 * F * itemsize
    vmem_limit = int(min(max(2 * working, 16 * 1024 * 1024), budget))

    x_spec = pl.BlockSpec((tb, F), lambda i: (i, 0))
    # Constant block index -> noise row stays VMEM-resident across all tiles.
    n_spec = pl.BlockSpec((1, F), lambda i: (0, 0))

    kwargs = {}
    if donate:
        # Only beneficial when the caller donates x at the jit boundary;
        # otherwise XLA would insert a defensive copy, so it is opt-in.
        kwargs["input_output_aliases"] = {0: 0}

    return pl.pallas_call(
        _add_noise_kernel,
        out_shape=jax.ShapeDtypeStruct((B, F), dtype),
        grid_spec=pltpu.PrefetchScalarGridSpec(
            num_scalar_prefetch=0,
            grid=grid,
            in_specs=[x_spec, n_spec],
            out_specs=x_spec,
        ),
        compiler_params=pltpu.CompilerParams(
            dimension_semantics=("parallel",),  # independent batch tiles
            vmem_limit_bytes=vmem_limit,
        ),
        **kwargs,
    )(x, noise_row)


def _augment_view(x, noise_row, *, donate=False):
    """Shape-based static dispatch: plain jnp for tiny views, Pallas otherwise."""
    B, F = x.shape
    if B * F * jnp.dtype(x.dtype).itemsize < _TINY_BYTES:
        return (x + noise_row.astype(x.dtype)).astype(x.dtype)
    return _pallas_add_noise(x, noise_row, donate=donate)


class GaussAugmentPallas:
    def __init__(self, noise_percentage=0.2, sigma=0.5, apply_prob=0.3,
                 input_shape=(1, 256), donate_inputs=False):
        self.apply_thresh = apply_prob
        self.noise_percentage = noise_percentage
        self.sigma = sigma
        self.input_shape = input_shape
        self.donate_inputs = donate_inputs

    def _make_masked_noise(self, key):
        """(1, F) masked Gaussian noise row (independent mask + noise per call,
        matching PyTorch's per-view augment())."""
        F = self.input_shape[1]
        num_masked = int(self.noise_percentage * F)
        k_perm, k_noise = jax.random.split(key)
        base = jnp.concatenate(
            [jnp.ones((num_masked,), jnp.float32),
             jnp.zeros((F - num_masked,), jnp.float32)])
        mask = jax.random.permutation(k_perm, base)          # exact-count mask
        noise = self.sigma * jax.random.normal(k_noise, (F,), dtype=jnp.float32)
        return (mask * noise)[None, :]                        # (1, F)

    def __call__(self, inputs, key):
        view_1, view_2, cell_ids = inputs['x1'], inputs['x2'], inputs['cell_ids']
        F = self.input_shape[1]
        assert view_1.shape[-1] == F and view_2.shape[-1] == F, \
            "feature dim of inputs must match input_shape[1]"

        k_s, k_n1, k_n2 = jax.random.split(key, 3)
        s = jax.random.uniform(k_s, (2,))

        def _gate(x, flag, k_noise):
            # Noise construction lives inside the apply branch -> no wasted
            # work and no HBM traffic at all for a skipped view.
            def _apply(xv):
                noise_row = self._make_masked_noise(k_noise)
                return _augment_view(xv, noise_row, donate=self.donate_inputs)

            return lax.cond(flag, _apply, lambda xv: xv, x)

        out1 = _gate(view_1, s[0] < self.apply_thresh, k_n1)
        out2 = _gate(view_2, s[1] < self.apply_thresh, k_n2)
        return {'x1': out1, 'x2': out2, 'cell_ids': cell_ids}


if __name__ == "__main__":
    key = jax.random.PRNGKey(0)
    kx1, kx2, kn, kfwd = jax.random.split(key, 4)

    # --- Direct Pallas-kernel correctness check (forced Pallas path) ---------
    B, F = 64, 512
    x = jax.random.normal(kx1, (B, F), dtype=jnp.float32)
    noise = jax.random.normal(kn, (1, F), dtype=jnp.float32)
    out = _pallas_add_noise(x, noise)
    jax.block_until_ready(out)
    assert jnp.allclose(out, x + noise, atol=1e-6), "pallas add-noise mismatch"

    # --- Full module: tiny-bypass path and Pallas path, several apply_probs --
    F2 = 256
    for B2 in (8, 2048):   # 8 -> jnp bypass; 2048 (2 MiB/view) -> Pallas path
        x1 = jax.random.normal(kx1, (B2, F2), dtype=jnp.float32)
        x2 = jax.random.normal(kx2, (B2, F2), dtype=jnp.float32)
        cell_ids = jnp.arange(B2, dtype=jnp.int32)
        for p in (1.0, 0.3, 0.0):
            module = GaussAugmentPallas(noise_percentage=0.2, sigma=0.5,
                                        apply_prob=p, input_shape=(1, F2))
            out_d = module({'x1': x1, 'x2': x2, 'cell_ids': cell_ids}, kfwd)
            jax.block_until_ready(out_d['x1'])
            jax.block_until_ready(out_d['x2'])
            assert out_d['x1'].shape == (B2, F2) and out_d['x2'].shape == (B2, F2)
            assert jnp.array_equal(out_d['cell_ids'], cell_ids)
            if p == 0.0:   # never augmented -> exact pass-through
                assert jnp.array_equal(out_d['x1'], x1)
                assert jnp.array_equal(out_d['x2'], x2)

    print("KERNEL_OK")
</pallas_src>

<mosaic_0001>
module attributes {stable_mosaic.version = 11 : i64} {
  func.func @_add_noise_kernel(%arg0: i32, %arg1: memref<32x512xf32, #tpu.memory_space<vmem>>, %arg2: memref<1x512xf32, #tpu.memory_space<vmem>>, %arg3: memref<32x512xf32, #tpu.memory_space<vmem>>) attributes {dimension_semantics = [#tpu.dimension_semantics<parallel>], iteration_bounds = array<i64: 2>, scalar_prefetch = 0 : i64, scratch_operands = 0 : i64, tpu.core_type = #tpu.core_type<tc>, window_params = [{transform_indices = @transform_0, window_bounds = array<i64: 32, 512>}, {pipeline_mode = #tpu.pipeline_mode<synchronous>, transform_indices = @transform_1, window_bounds = array<i64: 1, 512>}, {transform_indices = @transform_2, window_bounds = array<i64: 32, 512>}]} {
    %c0 = arith.constant 0 : index
    %c0_0 = arith.constant 0 : index
    %0 = vector.load %arg1[%c0, %c0_0] : memref<32x512xf32, #tpu.memory_space<vmem>>, vector<32x512xf32>
    %c0_1 = arith.constant 0 : index
    %c0_2 = arith.constant 0 : index
    %1 = vector.load %arg2[%c0_1, %c0_2] : memref<1x512xf32, #tpu.memory_space<vmem>>, vector<1x512xf32>
    %2 = vector.broadcast %1 : vector<1x512xf32> to vector<32x512xf32>
    %3 = arith.addf %0, %2 : vector<32x512xf32>
    %c0_3 = arith.constant 0 : index
    %c0_4 = arith.constant 0 : index
    %4 = vector.load %arg3[%c0_3, %c0_4] : memref<32x512xf32, #tpu.memory_space<vmem>>, vector<32x512xf32>
    tpu.vector_store %arg3[%c0_3, %c0_4], %3 {strides = array<i32>} : memref<32x512xf32, #tpu.memory_space<vmem>>, vector<32x512xf32>,
    return
  }
  func.func @transform_0(%arg0: i32) -> (i32, i32) {
    %c0_i32 = arith.constant 0 : i32
    %c0_i32_0 = arith.constant 0 : i32
    return %arg0, %c0_i32 : i32, i32
  }
  func.func @transform_1(%arg0: i32) -> (i32, i32) {
    %c0_i32 = arith.constant 0 : i32
    %c0_i32_0 = arith.constant 0 : i32
    %c0_i32_1 = arith.constant 0 : i32
    return %c0_i32, %c0_i32_0 : i32, i32
  }
  func.func @transform_2(%arg0: i32) -> (i32, i32) {
    %c0_i32 = arith.constant 0 : i32
    %c0_i32_0 = arith.constant 0 : i32
    return %arg0, %c0_i32 : i32, i32
  }
}

</mosaic_0001>

<llo_original>
// kernel: tpu_custom_call.1
$region0: #{tpu_custom_call.1}
  #allocation0 [shape = 'u32[]', space=smem, size = 0x4, offset = 0x4, fixed_abs, tag = 'smem constant byte address 0x4 - core index']
  #allocation1 [shape = 'u32[144,128]{1,0:T(1,128)}', space=vmem, size = 0x12000, scoped, tag = 'internal scratch']
  %s0 = inlined_call_operand.hbm [shape: f32[64,512], index: 0, kind: input, shape index: {}]
  %s1 = inlined_call_operand.hbm [shape: f32[1,512], index: 1, kind: input, shape index: {}]
  %s2 = inlined_call_operand.hbm [shape: f32[64,512], index: 2, kind: output, shape index: {}]
  %s3 = sld [smem:[#allocation0]]
  $region49: #{tpu_custom_call.1} parent=0
    _
  %s5 = ssub.s32 1, %s3
  %s6 = scalar_select 0, %s5, %s3
  $region1: #{tpu_custom_call.1} parent=0
    #allocation2 [shape = 'u8[131072]{0}', space=vmem, size = 0x20000, scoped, tag = 'input window, operand 0']
    #allocation3 [shape = 's32[2]{0}', space=sflag, size = 0x8, scoped, tag = 'scoped memory for tpu_custom_call.1']
    #allocation4 [shape = 's32[2]{0}', space=sflag, size = 0x8, scoped, tag = 'scoped memory for tpu_custom_call.1']
    #allocation5 [shape = 'u8[2048]{0}', space=vmem, size = 0x800, scoped, tag = 'input window, operand 1, single buffered']
    #allocation6 [shape = 's32[1]{0}', space=sflag, size = 0x4, scoped, tag = 'scoped memory for tpu_custom_call.1']
    #allocation7 [shape = 'u8[131072]{0}', space=vmem, size = 0x20000, scoped, tag = 'output window, operand 0']
    %7 = vsyncpa [#allocation3], 0
    %s8 = scalar_lea.sflag [#allocation3], 1
    %9 = vsyncpa %s8, 0
    %10 = vsyncpa [#allocation6], 0
    %11 = vsyncpa [#allocation4], 0
    %s12 = scalar_lea.sflag [#allocation4], 1
    %13 = vsyncpa %s12, 0
    loop: start=0, step=1, limit=4
    $region2: #{tpu_custom_call.1} parent=1 // loop_pre_header
      _
    $region3: #{tpu_custom_call.1} parent=1 // loop_header
      %s15 = sphi 0, %s19
      %p16 = scmp.ge.s32.totalorder %s15, 4
      %s25 = sphi 0, %s27
      %s28 = sphi 0, %s25
      %s29 = sphi 0, %s28
      %s45 = sphi 0, %s29
      %s49 = sphi 0, %s49
      %s51 = sphi 0, %s49
      %s52 = sphi 0, %s51
      %s66 = sphi 0, %s52
      %s72 = sphi 0, %s74
      %s75 = sphi 0, %s72
      %s76 = sphi 0, %s75
      %s92 = sphi 0, %s76
    $region4: #{tpu_custom_call.1} parent=1 // loop_header_branch
      %18 = sbr.rel (%p16) target = $region8
    $region5: #{tpu_custom_call.1} parent=1 // loop_body
      %s20 = ssub.s32 %s15, 1
      %s21 = ssub.s32 %s15, 2
      %s22 = sadd.s32 %s15, 1
      %s23 = ssub.s32 %s15, %s22
      %p24 = scmp.eq.s32.totalorder %s23, 0
      %s26 = sadd.s32 %s25, 1
      %s27 = scalar_select %p24, %s25, %s26
      %p30 = pneg %p24
      %p31 = scmp.eq.s32.totalorder %s15, 1
      %p32 = por %p30, %p31
      %p33 = scmp.ne.s32.totalorder %s25, %s28
      %p34 = scmp.eq.s32.totalorder %s15, 0
      %p35 = por %p33, %p34
      %p36 = scmp.ne.s32.totalorder %s25, %s28
      %p37 = scmp.eq.s32.totalorder %s20, 1
      %p38 = por %p36, %p37
      %p39 = scmp.ne.s32.totalorder %s28, %s29
      %p40 = scmp.eq.s32.totalorder %s20, 0
      %p41 = por %p39, %p40
      %p42 = scmp.ne.s32.totalorder %s28, %s29
      %p43 = scmp.eq.s32.totalorder %s21, 1
      %p44 = por %p42, %p43
      %p46 = scmp.ne.s32.totalorder %s29, %s45
      %p47 = scmp.eq.s32.totalorder %s21, 0
      %p48 = por %p46, %p47
      %s50 = sadd.s32 %s49, 1
      %p53 = scmp.eq.s32.totalorder %s15, 1
      %p54 = scmp.ne.s32.totalorder %s49, %s51
      %p55 = scmp.eq.s32.totalorder %s15, 0
      %p56 = por %p54, %p55
      %p57 = scmp.ne.s32.totalorder %s49, %s51
      %p58 = scmp.eq.s32.totalorder %s20, 1
      %p59 = por %p57, %p58
      %p60 = scmp.ne.s32.totalorder %s51, %s52
      %p61 = scmp.eq.s32.totalorder %s20, 0
      %p62 = por %p60, %p61
      %p63 = scmp.ne.s32.totalorder %s51, %s52
      %p64 = scmp.eq.s32.totalorder %s21, 1
      %p65 = por %p63, %p64
      %p67 = scmp.ne.s32.totalorder %s52, %s66
      %p68 = scmp.eq.s32.totalorder %s21, 0
      %p69 = por %p67, %p68
      %s70 = ssub.s32 %s15, %s22
      %p71 = scmp.eq.s32.totalorder %s70, 0
      %s73 = sadd.s32 %s72, 1
      %s74 = scalar_select %p71, %s72, %s73
      %p77 = pneg %p71
      %p78 = scmp.eq.s32.totalorder %s15, 1
      %p79 = por %p77, %p78
      %p80 = scmp.ne.s32.totalorder %s72, %s75
      %p81 = scmp.eq.s32.totalorder %s15, 0
      %p82 = por %p80, %p81
      %p83 = scmp.ne.s32.totalorder %s72, %s75
      %p84 = scmp.eq.s32.totalorder %s20, 1
      %p85 = por %p83, %p84
      %p86 = scmp.ne.s32.totalorder %s75, %s76
      %p87 = scmp.eq.s32.totalorder %s20, 0
      %p88 = por %p86, %p87
      %p89 = scmp.ne.s32.totalorder %s75, %s76
      %p90 = scmp.eq.s32.totalorder %s21, 1
      %p91 = por %p89, %p90
      %p93 = scmp.ne.s32.totalorder %s76, %s92
      %p94 = scmp.eq.s32.totalorder %s21, 0
      %p95 = por %p93, %p94
      %p96 = scmp.le.s32.totalorder 1, %s15
      %p97 = scmp.lt.s32.totalorder %s15, 3
      %p98 = pnand %p96, %p97
      %p99 = pneg %p98
      // Predicated region
      $region9: #{tpu_custom_call.1} parent=5 // pred_check
        _
      $region10: #{tpu_custom_call.1} parent=5 // pred_check_branch
        %101 = sbr.rel (%p98) target = $region12
      $region11: #{tpu_custom_call.1} parent=5 // pred_region
        %s102 = ssub.s32 %s15, 1
        // Predicated region
        $region13: #{tpu_custom_call.1} parent=11 // pred_check
          %p103 = pneg %p62
        $region14: #{tpu_custom_call.1} parent=11 // pred_check_branch
          %105 = sbr.rel (%p103) target = $region16
        $region15: #{tpu_custom_call.1} parent=11 // pred_region
          %s107 = ssub.s32 64, 64
          %108 = vsyncadd [#allocation6], %s107
          %s110 = sshll.u32 [#allocation5], 4
          %s111 = int_to_ptr.vmem [resolvable:$true] %s110
          %113 = dma.hbm_to_vmem [thread:$0]  %s1, 64, %s111, [#allocation6]
        $region16: #{tpu_custom_call.1} parent=11 // pred_fallthru
          _
      $region12: #{tpu_custom_call.1} parent=5 // pred_fallthru
        _
      %p114 = scmp.lt.s32.totalorder %s15, 2
      // Predicated region
      $region17: #{tpu_custom_call.1} parent=5 // pred_check
        %p115 = pneg %p114
      $region18: #{tpu_custom_call.1} parent=5 // pred_check_branch
        %117 = sbr.rel (%p115) target = $region20
      $region19: #{tpu_custom_call.1} parent=5 // pred_region
        // Predicated region
        $region21: #{tpu_custom_call.1} parent=19 // pred_check
          %p118 = pneg %p35
        $region22: #{tpu_custom_call.1} parent=19 // pred_check_branch
          %120 = sbr.rel (%p118) target = $region24
        $region23: #{tpu_custom_call.1} parent=19 // pred_region
          %s121 = sand.u32 %s25, 1
          %s122 = scalar_lea.sflag [#allocation3], %s121
          %s123 = sand.u32 %s25, 1
          %s124 = smul.addr %s123, 128
          %s125 = scalar_lea.vmem [#allocation2], %s124
          %s126 = smul.u32 4, %s15
          %s128 = ssub.s32 2048, 2048
          %129 = vsyncadd %s122, %s128
          %s130 = smul.addr %s126, 4
          %s131 = smul.addr %s130, 128
          %s132 = scalar_lea.hbm %s0, %s131
          %s133 = sshll.u32 %s125, 4
          %s134 = int_to_ptr.vmem [resolvable:$true] %s133
          %139 = dma.hbm_to_vmem [thread:$0]  %s132, 2048, %s134, %s122, 512, 512, 32
        $region24: #{tpu_custom_call.1} parent=19 // pred_fallthru
          _
      $region20: #{tpu_custom_call.1} parent=5 // pred_fallthru
        _
      %p140 = scmp.le.s32.totalorder 1, %s15
      %p141 = scmp.lt.s32.totalorder %s15, 3
      %p142 = pnand %p140, %p141
      %p143 = pneg %p142
      // Predicated region
      $region25: #{tpu_custom_call.1} parent=5 // pred_check
        _
      $region26: #{tpu_custom_call.1} parent=5 // pred_check_branch
        %145 = sbr.rel (%p142) target = $region28
      $region27: #{tpu_custom_call.1} parent=5 // pred_region
        %s146 = ssub.s32 %s15, 1
        %s147 = sand.u32 %s28, 1
        %s148 = scalar_lea.sflag [#allocation3], %s147
        %s149 = sand.u32 %s28, 1
        %s150 = smul.addr %s149, 128
        %s151 = scalar_lea.vmem [#allocation2], %s150
        // Predicated region
        $region29: #{tpu_custom_call.1} parent=27 // pred_check
          %p152 = pneg %p41
        $region30: #{tpu_custom_call.1} parent=27 // pred_check_branch
          %154 = sbr.rel (%p152) target = $region32
        $region31: #{tpu_custom_call.1} parent=27 // pred_region
          %155 = dma.done %s148, 2048
        $region32: #{tpu_custom_call.1} parent=27 // pred_fallthru
          _
        // Predicated region
        $region33: #{tpu_custom_call.1} parent=27 // pred_check
          %p156 = pneg %p62
        $region34: #{tpu_custom_call.1} parent=27 // pred_check_branch
          %158 = sbr.rel (%p156) target = $region36
        $region35: #{tpu_custom_call.1} parent=27 // pred_region
          %159 = dma.done [#allocation6], 64
        $region36: #{tpu_custom_call.1} parent=27 // pred_fallthru
          _
        %s160 = sand.u32 %s28, 1
        %s161 = scalar_lea.sflag [#allocation3], %s160
        %s162 = sand.u32 %s28, 1
        %s163 = smul.addr %s162, 128
        %s164 = scalar_lea.vmem [#allocation2], %s163
        %p165 = pneg %p41
        %p166 = pneg %p38
        %p167 = pneg %p62
        %p168 = pneg %p59
        %p169 = pneg %p88
        %p170 = pneg %p85
        %s171 = sand.u32 %s75, 1
        %s172 = scalar_lea.sflag [#allocation4], %s171
        %s173 = sand.u32 %s75, 1
        %s174 = smul.addr %s173, 128
        %s175 = scalar_lea.vmem [#allocation7], %s174
        %s176 = smul.u32 4, %s20
        %s177 = smul.u32 4, %s20
        %v178 = vld [vmem:[%s151] sm:$0xff]
        %v179 = vld [vmem:[%s151 + $0x8] sm:$0xff]
        %v180 = vld [vmem:[%s151 + $0x10] sm:$0xff]
        %v181 = vld [vmem:[%s151 + $0x18] sm:$0xff]
        %v182 = vld [vmem:[%s151 + $0x20] sm:$0xff]
        %v183 = vld [vmem:[%s151 + $0x28] sm:$0xff]
        %v184 = vld [vmem:[%s151 + $0x30] sm:$0xff]
        %v185 = vld [vmem:[%s151 + $0x38] sm:$0xff]
        %v186 = vld [vmem:[%s151 + $0x40] sm:$0xff]
        %v187 = vld [vmem:[%s151 + $0x48] sm:$0xff]
        %v188 = vld [vmem:[%s151 + $0x50] sm:$0xff]
        %v189 = vld [vmem:[%s151 + $0x58] sm:$0xff]
        %v190 = vld [vmem:[%s151 + $0x60] sm:$0xff]
        %v191 = vld [vmem:[%s151 + $0x68] sm:$0xff]
        %v192 = vld [vmem:[%s151 + $0x70] sm:$0xff]
        %v193 = vld [vmem:[%s151 + $0x78] sm:$0xff]
        %v194 = vld [vmem:[#allocation5] sm:$0xf]
        %v196 = vlaneseq
        %v197 = vshrl.u32 %v196, 7
        %v198 = vsub.s32 0, %v197
        %v199 = vrot.slane %v194, %v198
        %v200 = vlaneseq
        %v201 = vshrl.u32 %v200, 7
        %v202 = vsub.s32 1, %v201
        %v203 = vrot.slane %v194, %v202
        %v204 = vlaneseq
        %v205 = vshrl.u32 %v204, 7
        %v206 = vsub.s32 2, %v205
        %v207 = vrot.slane %v194, %v206
        %v208 = vlaneseq
        %v209 = vshrl.u32 %v208, 7
        %v210 = vsub.s32 3, %v209
        %v211 = vrot.slane %v194, %v210
        %v216 = vadd.f32 %v178, %v199
        %v217 = vadd.f32 %v179, %v203
        %v218 = vadd.f32 %v180, %v207
        %v219 = vadd.f32 %v181, %v211
        %v220 = vadd.f32 %v182, %v199
        %v221 = vadd.f32 %v183, %v203
        %v222 = vadd.f32 %v184, %v207
        %v223 = vadd.f32 %v185, %v211
        %v224 = vadd.f32 %v186, %v199
        %v225 = vadd.f32 %v187, %v203
        %v226 = vadd.f32 %v188, %v207
        %v227 = vadd.f32 %v189, %v211
        %v228 = vadd.f32 %v190, %v199
        %v229 = vadd.f32 %v191, %v203
        %v230 = vadd.f32 %v192, %v207
        %v231 = vadd.f32 %v193, %v211
        %232 = vst [vmem:[%s175] sm:$0xff] %v216
        %233 = vst [vmem:[%s175 + $0x8] sm:$0xff] %v217
        %234 = vst [vmem:[%s175 + $0x10] sm:$0xff] %v218
        %235 = vst [vmem:[%s175 + $0x18] sm:$0xff] %v219
        %236 = vst [vmem:[%s175 + $0x20] sm:$0xff] %v220
        %237 = vst [vmem:[%s175 + $0x28] sm:$0xff] %v221
        %238 = vst [vmem:[%s175 + $0x30] sm:$0xff] %v222
        %239 = vst [vmem:[%s175 + $0x38] sm:$0xff] %v223
        %240 = vst [vmem:[%s175 + $0x40] sm:$0xff] %v224
        %241 = vst [vmem:[%s175 + $0x48] sm:$0xff] %v225
        %242 = vst [vmem:[%s175 + $0x50] sm:$0xff] %v226
        %243 = vst [vmem:[%s175 + $0x58] sm:$0xff] %v227
        %244 = vst [vmem:[%s175 + $0x60] sm:$0xff] %v228
        %245 = vst [vmem:[%s175 + $0x68] sm:$0xff] %v229
        %246 = vst [vmem:[%s175 + $0x70] sm:$0xff] %v230
        %247 = vst [vmem:[%s175 + $0x78] sm:$0xff] %v231
        %s248 = sand.u32 %s75, 1
        %s249 = scalar_lea.sflag [#allocation4], %s248
        %s250 = sand.u32 %s75, 1
        %s251 = smul.addr %s250, 128
        %s252 = scalar_lea.vmem [#allocation7], %s251
        // Predicated region
        $region37: #{tpu_custom_call.1} parent=27 // pred_check
          %p253 = pneg %p85
        $region38: #{tpu_custom_call.1} parent=27 // pred_check_branch
          %255 = sbr.rel (%p253) target = $region40
        $region39: #{tpu_custom_call.1} parent=27 // pred_region
          %s256 = smul.u32 4, %s20
          %s258 = ssub.s32 2048, 2048
          %259 = vsyncadd %s249, %s258
          %s260 = smul.addr %s256, 4
          %s261 = smul.addr %s260, 128
          %s262 = scalar_lea.hbm %s2, %s261
          %s263 = sshll.u32 %s252, 4
          %s264 = int_to_ptr.vmem [resolvable:$true] %s263
          %269 = dma.vmem_to_hbm [thread:$0]  %s264, 2048, %s262, %s249, 512, 512, 32
        $region40: #{tpu_custom_call.1} parent=27 // pred_fallthru
          _
      $region28: #{tpu_custom_call.1} parent=5 // pred_fallthru
        _
      %p270 = scmp.le.s32.totalorder 2, %s15
      // Predicated region
      $region41: #{tpu_custom_call.1} parent=5 // pred_check
        %p271 = pneg %p270
      $region42: #{tpu_custom_call.1} parent=5 // pred_check_branch
        %273 = sbr.rel (%p271) target = $region44
      $region43: #{tpu_custom_call.1} parent=5 // pred_region
        %s274 = ssub.s32 %s15, 2
        // Predicated region
        $region45: #{tpu_custom_call.1} parent=43 // pred_check
          %p275 = pneg %p91
        $region46: #{tpu_custom_call.1} parent=43 // pred_check_branch
          %277 = sbr.rel (%p275) target = $region48
        $region47: #{tpu_custom_call.1} parent=43 // pred_region
          %s278 = sand.u32 %s76, 1
          %s279 = scalar_lea.sflag [#allocation4], %s278
          %s280 = sand.u32 %s76, 1
          %s281 = smul.addr %s280, 128
          %s282 = scalar_lea.vmem [#allocation7], %s281
          %283 = dma.done %s279, 2048
        $region48: #{tpu_custom_call.1} parent=43 // pred_fallthru
          _
      $region44: #{tpu_custom_call.1} parent=5 // pred_fallthru
        _
    $region6: #{tpu_custom_call.1} parent=1 // loop_footer
      %s19 = sadd.s32 1, %s15
    $region7: #{tpu_custom_call.1} parent=1 // loop_footer_branch
      %14 = sbr.rel target = $region3
    $region8: #{tpu_custom_call.1} parent=1 // loop_exit
      _
    %284 = vsyncpa [#allocation3], 1
    %s285 = scalar_lea.sflag [#allocation3], 1
    %286 = vsyncpa %s285, 1
    %287 = vsyncpa [#allocation6], 1
    %288 = vsyncpa [#allocation4], 1
    %s289 = scalar_lea.sflag [#allocation4], 1
    %290 = vsyncpa %s289, 1

</llo_original>
